<compile_context>
chip_gen: v6e
topology: v6e:2x2x1
jax: 0.10.0
libtpu: 0.0.40
codegen_flags: <defaults>
</compile_context>

<pallas_src>
import functools

import jax
import jax.numpy as jnp
from jax.experimental import pallas as pl
from jax.experimental.pallas import tpu as pltpu

LANE = 128
SUBLANE = 16  # bf16 sublane packing granularity (also fine for f32)


def _round_up(n, m):
    return ((n + m - 1) // m) * m


def nest_mlp_kernel(x_ref, w1_ref, b1_ref, w2_ref, b2_ref, w3_ref, b3_ref, o_ref):
    """One batch tile: x @ W1 -> ReLU -> @ W2 -> ReLU -> @ W3 (+ biases)."""
    cd = w1_ref.dtype  # MXU operand dtype (bf16 on the fast path, f32 otherwise)
    # Biases are (1, F) f32 refs; read once and broadcast against the f32 MXU result.
    h1 = jnp.dot(x_ref[...], w1_ref[...], preferred_element_type=jnp.float32) + b1_ref[...]
    h1 = jnp.maximum(h1, 0.0)
    h2 = jnp.dot(h1.astype(cd), w2_ref[...], preferred_element_type=jnp.float32) + b2_ref[...]
    h2 = jnp.maximum(h2, 0.0)
    y = jnp.dot(h2.astype(cd), w3_ref[...], preferred_element_type=jnp.float32) + b3_ref[...]
    o_ref[...] = y.astype(o_ref.dtype)


def _resident_spec(arr):
    # Full-array block with a constant block index: stays resident in VMEM,
    # never re-fetched across grid steps.
    return pl.BlockSpec(arr.shape, lambda i: (0, 0))


@functools.partial(jax.jit, static_argnames=("batch_tile", "use_bf16"))
def nest_mlp(x, params, *, batch_tile=512, use_bf16=True):
    w1, b1, w2, b2, w3, b3 = params
    B, in_dim = x.shape
    h1_dim, h2_dim, out_dim = w1.shape[1], w2.shape[1], w3.shape[1]

    # Lane-dense output: pad the last layer to a multiple of 128 output columns.
    out_pad = _round_up(out_dim, LANE)
    w3p = jnp.pad(w3, ((0, 0), (0, out_pad - out_dim)))
    b3p = jnp.pad(b3, ((0, 0), (0, out_pad - out_dim)))

    # Batch tiling: tile is a multiple of 16 sublanes, capped at `batch_tile`.
    tb = min(batch_tile, _round_up(B, SUBLANE))
    b_pad = _round_up(B, tb)
    if b_pad != B:
        x = jnp.pad(x, ((0, b_pad - B), (0, 0)))

    compute_dtype = jnp.bfloat16 if use_bf16 else jnp.float32
    x_c = x.astype(compute_dtype)
    w1c = w1.astype(compute_dtype)
    w2c = w2.astype(compute_dtype)
    w3c = w3p.astype(compute_dtype)
    b1f = b1.astype(jnp.float32)
    b2f = b2.astype(jnp.float32)
    b3f = b3p.astype(jnp.float32)

    grid = (b_pad // tb,)
    flops = 2 * b_pad * (in_dim * h1_dim + h1_dim * h2_dim + h2_dim * out_pad)
    bytes_accessed = (
        x_c.size * x_c.dtype.itemsize
        + sum(a.size * a.dtype.itemsize for a in (w1c, b1f, w2c, b2f, w3c, b3f))
        + b_pad * out_pad * 4
    )

    out_padded = pl.pallas_call(
        nest_mlp_kernel,
        out_shape=jax.ShapeDtypeStruct((b_pad, out_pad), jnp.float32),
        grid=grid,
        in_specs=[
            pl.BlockSpec((tb, in_dim), lambda i: (i, 0)),  # batch-tiled activations
            _resident_spec(w1c),
            _resident_spec(b1f),
            _resident_spec(w2c),
            _resident_spec(b2f),
            _resident_spec(w3c),
            _resident_spec(b3f),
        ],
        out_specs=pl.BlockSpec((tb, out_pad), lambda i: (i, 0)),
        compiler_params=pltpu.CompilerParams(dimension_semantics=("parallel",)),
        cost_estimate=pl.CostEstimate(
            flops=flops, transcendentals=0, bytes_accessed=bytes_accessed
        ),
    )(x_c, w1c, b1f, w2c, b2f, w3c, b3f)

    return out_padded[:B, :out_dim]


def init_params(key):
    # Deterministic init mimicking torch.nn.Linear: U(-1/sqrt(fan_in), +1/sqrt(fan_in)).
    # Weights stored transposed vs. torch, i.e. (in, out), so y = x @ W + b.
    dims = [(20, 64), (64, 32), (32, 16)]
    params = []
    for i, (fan_in, fan_out) in enumerate(dims):
        kw, kb = jax.random.split(jax.random.fold_in(key, i))
        bound = 1.0 / (fan_in ** 0.5)
        w = jax.random.uniform(kw, (fan_in, fan_out), jnp.float32, -bound, bound)
        b = jax.random.uniform(kb, (1, fan_out), jnp.float32, -bound, bound)
        params += [w, b]
    return tuple(params)


def nest_mlp_ref(x, params, *, use_bf16=True):
    """Pure-JAX golden, mirroring the kernel's operand quantization exactly."""
    w1, b1, w2, b2, w3, b3 = params
    cd = jnp.bfloat16 if use_bf16 else jnp.float32

    def q(a):
        return a.astype(cd).astype(jnp.float32)

    def mm(a, b):
        return jnp.dot(q(a), q(b), preferred_element_type=jnp.float32,
                       precision=jax.lax.Precision.HIGHEST)

    h1 = jnp.maximum(mm(x, w1) + b1, 0.0)
    h2 = jnp.maximum(mm(h1, w2) + b2, 0.0)
    return mm(h2, w3) + b3


if __name__ == "__main__":
    key = jax.random.PRNGKey(0)
    kx, kp = jax.random.split(key)
    # Matches X = torch.rand(2, 20)
    x = jax.random.uniform(kx, (2, 20), jnp.float32)
    params = init_params(kp)

    # Optimized path: bf16 MXU operands, f32 accumulate / bias / ReLU.
    out = jax.block_until_ready(nest_mlp(x, params, use_bf16=True))
    assert out.shape == (2, 16)
    ref_bf16 = nest_mlp_ref(x, params, use_bf16=True)
    ref_f32 = nest_mlp_ref(x, params, use_bf16=False)
    assert jnp.allclose(out, ref_bf16, atol=1e-5, rtol=1e-5)      # exact-numerics golden
    assert jnp.allclose(out, ref_f32, atol=2e-2, rtol=2e-2)       # semantics vs f32 module

    # Full-f32 path still available and matches the f32 reference tightly.
    out_f32 = jax.block_until_ready(nest_mlp(x, params, use_bf16=False))
    assert jnp.allclose(out_f32, ref_f32, atol=1e-4, rtol=1e-4)

    # Larger batch exercising the multi-tile grid + batch padding path.
    xb = jax.random.uniform(jax.random.fold_in(key, 7), (1000, 20), jnp.float32)
    outb = jax.block_until_ready(nest_mlp(xb, params, use_bf16=True, batch_tile=512))
    assert outb.shape == (1000, 16)
    assert jnp.allclose(outb, nest_mlp_ref(xb, params, use_bf16=True), atol=1e-4, rtol=1e-4)

    print("KERNEL_OK")
</pallas_src>

<mosaic_0001>
module attributes {stable_mosaic.version = 11 : i64} {
  func.func @nest_mlp_kernel(%arg0: i32, %arg1: memref<16x20xbf16, #tpu.memory_space<vmem>>, %arg2: memref<20x64xbf16, #tpu.memory_space<vmem>>, %arg3: memref<1x64xf32, #tpu.memory_space<vmem>>, %arg4: memref<64x32xbf16, #tpu.memory_space<vmem>>, %arg5: memref<1x32xf32, #tpu.memory_space<vmem>>, %arg6: memref<32x128xbf16, #tpu.memory_space<vmem>>, %arg7: memref<1x128xf32, #tpu.memory_space<vmem>>, %arg8: memref<16x128xf32, #tpu.memory_space<vmem>>) attributes {dimension_semantics = [#tpu.dimension_semantics<parallel>], iteration_bounds = array<i64: 1>, scalar_prefetch = 0 : i64, scratch_operands = 0 : i64, tpu.core_type = #tpu.core_type<tc>, window_params = [{transform_indices = @transform_0, window_bounds = array<i64: 16, 20>}, {pipeline_mode = #tpu.pipeline_mode<synchronous>, transform_indices = @transform_1, window_bounds = array<i64: 20, 64>}, {pipeline_mode = #tpu.pipeline_mode<synchronous>, transform_indices = @transform_2, window_bounds = array<i64: 1, 64>}, {pipeline_mode = #tpu.pipeline_mode<synchronous>, transform_indices = @transform_3, window_bounds = array<i64: 64, 32>}, {pipeline_mode = #tpu.pipeline_mode<synchronous>, transform_indices = @transform_4, window_bounds = array<i64: 1, 32>}, {pipeline_mode = #tpu.pipeline_mode<synchronous>, transform_indices = @transform_5, window_bounds = array<i64: 32, 128>}, {pipeline_mode = #tpu.pipeline_mode<synchronous>, transform_indices = @transform_6, window_bounds = array<i64: 1, 128>}, {transform_indices = @transform_7, window_bounds = array<i64: 16, 128>}]} {
    %c0 = arith.constant 0 : index
    %c0_0 = arith.constant 0 : index
    %0 = vector.load %arg1[%c0, %c0_0] : memref<16x20xbf16, #tpu.memory_space<vmem>>, vector<16x20xbf16>
    %c0_1 = arith.constant 0 : index
    %c0_2 = arith.constant 0 : index
    %1 = vector.load %arg2[%c0_1, %c0_2] : memref<20x64xbf16, #tpu.memory_space<vmem>>, vector<20x64xbf16>
    %cst = arith.constant dense<0.000000e+00> : vector<16x64xf32>
    %2 = tpu.matmul %0, %1, %cst {dimension_numbers = #tpu.dot_dimension_numbers<[1], [0], [0], [1], [0, 0, 1, 1], [], []>} : vector<16x20xbf16>, vector<20x64xbf16>, vector<16x64xf32> -> vector<16x64xf32>
    %c0_3 = arith.constant 0 : index
    %c0_4 = arith.constant 0 : index
    %3 = vector.load %arg3[%c0_3, %c0_4] : memref<1x64xf32, #tpu.memory_space<vmem>>, vector<1x64xf32>
    %4 = vector.broadcast %3 : vector<1x64xf32> to vector<16x64xf32>
    %5 = arith.addf %2, %4 : vector<16x64xf32>
    %cst_5 = arith.constant 0.000000e+00 : f32
    %6 = vector.broadcast %cst_5 : f32 to vector<16x64xf32>
    %7 = arith.maximumf %5, %6 : vector<16x64xf32>
    %8 = arith.truncf %7 : vector<16x64xf32> to vector<16x64xbf16>
    %c0_6 = arith.constant 0 : index
    %c0_7 = arith.constant 0 : index
    %9 = vector.load %arg4[%c0_6, %c0_7] : memref<64x32xbf16, #tpu.memory_space<vmem>>, vector<64x32xbf16>
    %cst_8 = arith.constant dense<0.000000e+00> : vector<16x32xf32>
    %10 = tpu.matmul %8, %9, %cst_8 {dimension_numbers = #tpu.dot_dimension_numbers<[1], [0], [0], [1], [0, 0, 1, 1], [], []>} : vector<16x64xbf16>, vector<64x32xbf16>, vector<16x32xf32> -> vector<16x32xf32>
    %c0_9 = arith.constant 0 : index
    %c0_10 = arith.constant 0 : index
    %11 = vector.load %arg5[%c0_9, %c0_10] : memref<1x32xf32, #tpu.memory_space<vmem>>, vector<1x32xf32>
    %12 = vector.broadcast %11 : vector<1x32xf32> to vector<16x32xf32>
    %13 = arith.addf %10, %12 : vector<16x32xf32>
    %cst_11 = arith.constant 0.000000e+00 : f32
    %14 = vector.broadcast %cst_11 : f32 to vector<16x32xf32>
    %15 = arith.maximumf %13, %14 : vector<16x32xf32>
    %16 = arith.truncf %15 : vector<16x32xf32> to vector<16x32xbf16>
    %c0_12 = arith.constant 0 : index
    %c0_13 = arith.constant 0 : index
    %17 = vector.load %arg6[%c0_12, %c0_13] : memref<32x128xbf16, #tpu.memory_space<vmem>>, vector<32x128xbf16>
    %cst_14 = arith.constant dense<0.000000e+00> : vector<16x128xf32>
    %18 = tpu.matmul %16, %17, %cst_14 {dimension_numbers = #tpu.dot_dimension_numbers<[1], [0], [0], [1], [0, 0, 1, 1], [], []>} : vector<16x32xbf16>, vector<32x128xbf16>, vector<16x128xf32> -> vector<16x128xf32>
    %c0_15 = arith.constant 0 : index
    %c0_16 = arith.constant 0 : index
    %19 = vector.load %arg7[%c0_15, %c0_16] : memref<1x128xf32, #tpu.memory_space<vmem>>, vector<1x128xf32>
    %20 = vector.broadcast %19 : vector<1x128xf32> to vector<16x128xf32>
    %21 = arith.addf %18, %20 : vector<16x128xf32>
    %c0_17 = arith.constant 0 : index
    %c0_18 = arith.constant 0 : index
    %22 = vector.load %arg8[%c0_17, %c0_18] : memref<16x128xf32, #tpu.memory_space<vmem>>, vector<16x128xf32>
    tpu.vector_store %arg8[%c0_17, %c0_18], %21 {strides = array<i32>} : memref<16x128xf32, #tpu.memory_space<vmem>>, vector<16x128xf32>,
    return
  }
  func.func @transform_0(%arg0: i32) -> (i32, i32) {
    %c0_i32 = arith.constant 0 : i32
    %c0_i32_0 = arith.constant 0 : i32
    return %arg0, %c0_i32 : i32, i32
  }
  func.func @transform_1(%arg0: i32) -> (i32, i32) {
    %c0_i32 = arith.constant 0 : i32
    %c0_i32_0 = arith.constant 0 : i32
    %c0_i32_1 = arith.constant 0 : i32
    return %c0_i32, %c0_i32_0 : i32, i32
  }
  func.func @transform_2(%arg0: i32) -> (i32, i32) {
    %c0_i32 = arith.constant 0 : i32
    %c0_i32_0 = arith.constant 0 : i32
    %c0_i32_1 = arith.constant 0 : i32
    return %c0_i32, %c0_i32_0 : i32, i32
  }
  func.func @transform_3(%arg0: i32) -> (i32, i32) {
    %c0_i32 = arith.constant 0 : i32
    %c0_i32_0 = arith.constant 0 : i32
    %c0_i32_1 = arith.constant 0 : i32
    return %c0_i32, %c0_i32_0 : i32, i32
  }
  func.func @transform_4(%arg0: i32) -> (i32, i32) {
    %c0_i32 = arith.constant 0 : i32
    %c0_i32_0 = arith.constant 0 : i32
    %c0_i32_1 = arith.constant 0 : i32
    return %c0_i32, %c0_i32_0 : i32, i32
  }
  func.func @transform_5(%arg0: i32) -> (i32, i32) {
    %c0_i32 = arith.constant 0 : i32
    %c0_i32_0 = arith.constant 0 : i32
    %c0_i32_1 = arith.constant 0 : i32
    return %c0_i32, %c0_i32_0 : i32, i32
  }
  func.func @transform_6(%arg0: i32) -> (i32, i32) {
    %c0_i32 = arith.constant 0 : i32
    %c0_i32_0 = arith.constant 0 : i32
    %c0_i32_1 = arith.constant 0 : i32
    return %c0_i32, %c0_i32_0 : i32, i32
  }
  func.func @transform_7(%arg0: i32) -> (i32, i32) {
    %c0_i32 = arith.constant 0 : i32
    %c0_i32_0 = arith.constant 0 : i32
    return %arg0, %c0_i32 : i32, i32
  }
}

</mosaic_0001>

<llo_original>
// kernel: nest_mlp.1
$region0: #{nest_mlp.1}
  #allocation0 [shape = 'u32[]', space=smem, size = 0x4, offset = 0x4, fixed_abs, tag = 'smem constant byte address 0x4 - core index']
  #allocation1 [shape = 'u32[144,128]{1,0:T(1,128)}', space=vmem, size = 0x12000, scoped, tag = 'internal scratch']
  %s0 = inlined_call_operand.vmem [shape: bf16[16,20], index: 0, kind: input, shape index: {}]
  %s1 = inlined_call_operand.vmem [shape: bf16[20,64], index: 1, kind: input, shape index: {}]
  %s2 = inlined_call_operand.vmem [shape: f32[1,64], index: 2, kind: input, shape index: {}]
  %s3 = inlined_call_operand.vmem [shape: bf16[64,32], index: 3, kind: input, shape index: {}]
  %s4 = inlined_call_operand.vmem [shape: f32[1,32], index: 4, kind: input, shape index: {}]
  %s5 = inlined_call_operand.vmem [shape: bf16[32,128], index: 5, kind: input, shape index: {}]
  %s6 = inlined_call_operand.vmem [shape: f32[1,128], index: 6, kind: input, shape index: {}]
  %s7 = inlined_call_operand.vmem [shape: f32[16,128], index: 7, kind: output, shape index: {}]
  %s8 = sld [smem:[#allocation0]]
  $region38: #{nest_mlp.1} parent=0
    _
  %s10 = ssub.s32 1, %s8
  %s11 = scalar_select 0, %s10, %s8
  // Predicated region
  $region2: #{nest_mlp.1} parent=0 // pred_check
    _
  $region3: #{nest_mlp.1} parent=0 // pred_check_branch
    %13 = sbr.rel (0) target = $region5
  $region4: #{nest_mlp.1} parent=0 // pred_region
    _
  $region5: #{nest_mlp.1} parent=0 // pred_fallthru
    _
  // Predicated region
  $region6: #{nest_mlp.1} parent=0 // pred_check
    _
  $region7: #{nest_mlp.1} parent=0 // pred_check_branch
    %15 = sbr.rel (0) target = $region9
  $region8: #{nest_mlp.1} parent=0 // pred_region
    _
  $region9: #{nest_mlp.1} parent=0 // pred_fallthru
    _
  // Predicated region
  $region10: #{nest_mlp.1} parent=0 // pred_check
    _
  $region11: #{nest_mlp.1} parent=0 // pred_check_branch
    %17 = sbr.rel (0) target = $region13
  $region12: #{nest_mlp.1} parent=0 // pred_region
    _
  $region13: #{nest_mlp.1} parent=0 // pred_fallthru
    _
  // Predicated region
  $region14: #{nest_mlp.1} parent=0 // pred_check
    _
  $region15: #{nest_mlp.1} parent=0 // pred_check_branch
    %19 = sbr.rel (0) target = $region17
  $region16: #{nest_mlp.1} parent=0 // pred_region
    _
  $region17: #{nest_mlp.1} parent=0 // pred_fallthru
    _
  // Predicated region
  $region18: #{nest_mlp.1} parent=0 // pred_check
    _
  $region19: #{nest_mlp.1} parent=0 // pred_check_branch
    %21 = sbr.rel (0) target = $region21
  $region20: #{nest_mlp.1} parent=0 // pred_region
    _
  $region21: #{nest_mlp.1} parent=0 // pred_fallthru
    _
  // Predicated region
  $region22: #{nest_mlp.1} parent=0 // pred_check
    _
  $region23: #{nest_mlp.1} parent=0 // pred_check_branch
    %23 = sbr.rel (0) target = $region25
  $region24: #{nest_mlp.1} parent=0 // pred_region
    _
  $region25: #{nest_mlp.1} parent=0 // pred_fallthru
    _
  // Predicated region
  $region26: #{nest_mlp.1} parent=0 // pred_check
    _
  $region27: #{nest_mlp.1} parent=0 // pred_check_branch
    %25 = sbr.rel (0) target = $region29
  $region28: #{nest_mlp.1} parent=0 // pred_region
    _
  $region29: #{nest_mlp.1} parent=0 // pred_fallthru
    _
  %v27 = vld [vmem:[%s0] sm:$0xf]
  %v28 = vld [vmem:[%s0 + $0x4] sm:$0xf]
  %v29 = vld [vmem:[%s1] sm:$0xf]
  %v30 = vld [vmem:[%s1 + $0x4] sm:$0xf]
  %v31 = vld [vmem:[%s1 + $0x8] sm:$0x3]
  %v32 = vld [vmem:[%s2] sm:$0x1]
  %v34 = vlaneseq
  %v35 = vshrl.u32 %v34, 7
  %v36 = vsub.s32 0, %v35
  %v37 = vrot.slane %v32, %v36
  %v41 = vunpack.c.l.b16 %v27
  %v42 = vunpack.c.l.b16 %v28
  %v43 = vpack.c.b16 %v42, %v41
  %v47 = vunpack.c.l.b16 %v29
  %v48 = vunpack.c.l.b16 %v30
  %v49 = vunpack.c.l.b16 %v31
  %v50 = vpack.c.b16 %v48, %v47
  %v51 = vpack.c.b16 %v49, %v49
  %vm53 = vcmask 162816
  %v55 = vsel %vm53, %v43, 0
  %vm57 = vcmask 1041408
  %v59 = vsel %vm57, %v51, 0
  %61 = vmatprep.subr.bf16.mxu0 0
  %62 = vmatpush1.bf16.msra.mxu0 0
  %63 = vmatprep.subr.bf16.mxu0 0
  %64 = vmatpush1.bf16.msra.mxu0 0
  %65 = vmatprep.subr.bf16.mxu0 0
  %66 = vmatpush1.bf16.msra.mxu0 0
  %67 = vmatprep.subr.bf16.mxu0 0
  %68 = vmatpush1.bf16.msra.mxu0 0
  %69 = vmatprep.subr.bf16.mxu0 0
  %70 = vmatpush1.bf16.msra.mxu0 0
  %71 = vmatprep.subr.bf16.mxu0 0
  %72 = vmatpush1.bf16.msra.mxu0 0
  %73 = vmatprep.subr.bf16.mxu0 0
  %74 = vmatpush1.bf16.msra.mxu0 %v59
  %75 = vmatprep.subr.bf16.mxu0 0
  %76 = vmatpush1.bf16.msra.mxu0 %v50
  %77 = vmatprep.subr.bf16.mxu0 0
  %78 = vmatpush2.bf16.msra.mxu0 0
  %79 = vmatprep.subr.bf16.mxu0 0
  %80 = vmatpush2.bf16.msra.mxu0 0
  %81 = vmatprep.subr.bf16.mxu0 0
  %82 = vmatpush2.bf16.msra.mxu0 0
  %83 = vmatprep.subr.bf16.mxu0 0
  %84 = vmatpush2.bf16.msra.mxu0 0
  %85 = vmatprep.subr.bf16.mxu0 0
  %86 = vmatpush2.bf16.msra.mxu0 0
  %87 = vmatprep.subr.bf16.mxu0 0
  %88 = vmatpush2.bf16.msra.mxu0 0
  %89 = vmatprep.subr.bf16.mxu0 0
  %90 = vmatpush2.bf16.msra.mxu0 0
  %91 = vmatprep.subr.bf16.mxu0 0
  %92 = vmatpush2.bf16.msra.mxu0 0
  %93 = vmatprep.mubr.bf16.mxu0 0
  %94 = vmatmul.mubr.bf16.gmra.mxu0 %v55
  %v95 = vpop.f32.mrf.mxu0
  %v96 = vadd.f32 %v37, %v95
  %v97 = vpop.f32.mrf.mxu0
  %v98 = vpop.f32.mrf.mxu0
  %v99 = vadd.f32 %v37, %v98
  %v100 = vpop.f32.mrf.mxu0
  %101 = vdwg.mxu0
  %v102 = vmax.f32 %v96, 0.0
  %v103 = vmax.f32 %v99, 0.0
  %v104 = vpack.c.bf16 %v103, %v102
  %v105 = vld [vmem:[%s3] sm:$0xf]
  %v106 = vld [vmem:[%s3 + $0x4] sm:$0xf]
  %v107 = vld [vmem:[%s3 + $0x8] sm:$0xf]
  %v108 = vld [vmem:[%s3 + $0xc] sm:$0xf]
  %v109 = vld [vmem:[%s3 + $0x10] sm:$0xf]
  %v110 = vld [vmem:[%s3 + $0x14] sm:$0xf]
  %v111 = vld [vmem:[%s3 + $0x18] sm:$0xf]
  %v112 = vld [vmem:[%s3 + $0x1c] sm:$0xf]
  %v113 = vld [vmem:[%s4] sm:$0x1]
  %v115 = vlaneseq
  %v116 = vshrl.u32 %v115, 7
  %v117 = vsub.s32 0, %v116
  %v118 = vrot.slane %v113, %v117
  %v128 = vunpack.c.l.b16 %v105
  %v129 = vunpack.c.l.b16 %v106
  %v130 = vunpack.c.l.b16 %v107
  %v131 = vunpack.c.l.b16 %v108
  %v132 = vunpack.c.l.b16 %v109
  %v133 = vunpack.c.l.b16 %v110
  %v134 = vunpack.c.l.b16 %v111
  %v135 = vunpack.c.l.b16 %v112
  %v136 = vpack.c.b16 %v129, %v128
  %v137 = vpack.c.b16 %v131, %v130
  %v138 = vpack.c.b16 %v133, %v132
  %v139 = vpack.c.b16 %v135, %v134
  %vm144 = vcmask 523264
  %v146 = vsel %vm144, %v104, 0
  %148 = vmatprep.subr.bf16.mxu0 0
  %149 = vmatpush1.bf16.msra.mxu0 0
  %150 = vmatprep.subr.bf16.mxu0 0
  %151 = vmatpush1.bf16.msra.mxu0 0
  %152 = vmatprep.subr.bf16.mxu0 0
  %153 = vmatpush1.bf16.msra.mxu0 0
  %154 = vmatprep.subr.bf16.mxu0 0
  %155 = vmatpush1.bf16.msra.mxu0 0
  %156 = vmatprep.subr.bf16.mxu0 0
  %157 = vmatpush1.bf16.msra.mxu0 %v139
  %158 = vmatprep.subr.bf16.mxu0 0
  %159 = vmatpush1.bf16.msra.mxu0 %v138
  %160 = vmatprep.subr.bf16.mxu0 0
  %161 = vmatpush1.bf16.msra.mxu0 %v137
  %162 = vmatprep.subr.bf16.mxu0 0
  %163 = vmatpush1.bf16.msra.mxu0 %v136
  %164 = vmatprep.subr.bf16.mxu0 0
  %165 = vmatpush2.bf16.msra.mxu0 0
  %166 = vmatprep.subr.bf16.mxu0 0
  %167 = vmatpush2.bf16.msra.mxu0 0
  %168 = vmatprep.subr.bf16.mxu0 0
  %169 = vmatpush2.bf16.msra.mxu0 0
  %170 = vmatprep.subr.bf16.mxu0 0
  %171 = vmatpush2.bf16.msra.mxu0 0
  %172 = vmatprep.subr.bf16.mxu0 0
  %173 = vmatpush2.bf16.msra.mxu0 0
  %174 = vmatprep.subr.bf16.mxu0 0
  %175 = vmatpush2.bf16.msra.mxu0 0
  %176 = vmatprep.subr.bf16.mxu0 0
  %177 = vmatpush2.bf16.msra.mxu0 0
  %178 = vmatprep.subr.bf16.mxu0 0
  %179 = vmatpush2.bf16.msra.mxu0 0
  %180 = vmatprep.mubr.bf16.mxu0 0
  %181 = vmatmul.mubr.bf16.gmra.mxu0 %v146
  %v182 = vpop.f32.mrf.mxu0
  %v183 = vadd.f32 %v118, %v182
  %v184 = vpop.f32.mrf.mxu0
  %v185 = vpop.f32.mrf.mxu0
  %v186 = vadd.f32 %v118, %v185
  %v187 = vpop.f32.mrf.mxu0
  %188 = vdwg.mxu0
  %v189 = vmax.f32 %v183, 0.0
  %v190 = vmax.f32 %v186, 0.0
  %v191 = vpack.c.bf16 %v190, %v189
  %v192 = vld [vmem:[%s5] sm:$0xf]
  %v193 = vld [vmem:[%s5 + $0x4] sm:$0xf]
  %v194 = vld [vmem:[%s5 + $0x8] sm:$0xf]
  %v195 = vld [vmem:[%s5 + $0xc] sm:$0xf]
  %v196 = vld [vmem:[%s6] sm:$0x1]
  %v198 = vlaneseq
  %v199 = vshrl.u32 %v198, 7
  %v200 = vsub.s32 0, %v199
  %v201 = vrot.slane %v196, %v200
  %v207 = vunpack.c.l.b16 %v192
  %v208 = vunpack.c.l.b16 %v193
  %v209 = vunpack.c.l.b16 %v194
  %v210 = vunpack.c.l.b16 %v195
  %v211 = vpack.c.b16 %v208, %v207
  %v212 = vpack.c.b16 %v210, %v209
  %vm215 = vcmask 261120
  %v217 = vsel %vm215, %v191, 0
  %219 = vmatprep.subr.bf16.mxu0 0
  %220 = vmatpush1.bf16.msra.mxu0 0
  %221 = vmatprep.subr.bf16.mxu0 0
  %222 = vmatpush1.bf16.msra.mxu0 0
  %223 = vmatprep.subr.bf16.mxu0 0
  %224 = vmatpush1.bf16.msra.mxu0 0
  %225 = vmatprep.subr.bf16.mxu0 0
  %226 = vmatpush1.bf16.msra.mxu0 0
  %227 = vmatprep.subr.bf16.mxu0 0
  %228 = vmatpush1.bf16.msra.mxu0 0
  %229 = vmatprep.subr.bf16.mxu0 0
  %230 = vmatpush1.bf16.msra.mxu0 0
  %231 = vmatprep.subr.bf16.mxu0 0
  %232 = vmatpush1.bf16.msra.mxu0 %v212
  %233 = vmatprep.subr.bf16.mxu0 0
  %234 = vmatpush1.bf16.msra.mxu0 %v211
  %235 = vmatprep.subr.bf16.mxu0 0
  %236 = vmatpush2.bf16.msra.mxu0 0
  %237 = vmatprep.subr.bf16.mxu0 0
  %238 = vmatpush2.bf16.msra.mxu0 0
  %239 = vmatprep.subr.bf16.mxu0 0
  %240 = vmatpush2.bf16.msra.mxu0 0
  %241 = vmatprep.subr.bf16.mxu0 0
  %242 = vmatpush2.bf16.msra.mxu0 0
  %243 = vmatprep.subr.bf16.mxu0 0
  %244 = vmatpush2.bf16.msra.mxu0 0
  %245 = vmatprep.subr.bf16.mxu0 0
  %246 = vmatpush2.bf16.msra.mxu0 0
  %247 = vmatprep.subr.bf16.mxu0 0
  %248 = vmatpush2.bf16.msra.mxu0 0
  %249 = vmatprep.subr.bf16.mxu0 0
  %250 = vmatpush2.bf16.msra.mxu0 0
  %251 = vmatprep.mubr.bf16.mxu0 0
  %252 = vmatmul.mubr.bf16.gmra.mxu0 %v217
  %v253 = vpop.f32.mrf.mxu0
  %v254 = vadd.f32 %v201, %v253
  %v255 = vpop.f32.mrf.mxu0
  %v256 = vpop.f32.mrf.mxu0
  %v257 = vadd.f32 %v201, %v256
  %v258 = vpop.f32.mrf.mxu0
  %259 = vdwg.mxu0
  %260 = vst [vmem:[%s7] sm:$0xff] %v254
  %261 = vst [vmem:[%s7 + $0x8] sm:$0xff] %v257
  // Predicated region
  $region30: #{nest_mlp.1} parent=0 // pred_check
    _
  $region31: #{nest_mlp.1} parent=0 // pred_check_branch
    %263 = sbr.rel (0) target = $region33
  $region32: #{nest_mlp.1} parent=0 // pred_region
    _
  $region33: #{nest_mlp.1} parent=0 // pred_fallthru
    _
  // Predicated region
  $region34: #{nest_mlp.1} parent=0 // pred_check
    _
  $region35: #{nest_mlp.1} parent=0 // pred_check_branch
    %265 = sbr.rel (0) target = $region37
  $region36: #{nest_mlp.1} parent=0 // pred_region
    _
  $region37: #{nest_mlp.1} parent=0 // pred_fallthru
    _

</llo_original>
